<compile_context>
chip_gen: v7x
topology: tpu7x:2x2x1
jax: 0.10.0
libtpu: 0.0.40
codegen_flags: <defaults>
</compile_context>

<pallas_src>
import math

import jax
import jax.numpy as jnp
from jax.experimental import pallas as pl
from jax.experimental.pallas import tpu as pltpu


def _round_up(x, m):
    return ((x + m - 1) // m) * m


# ---------------------------------------------------------------------------
# In-kernel activations.
# ---------------------------------------------------------------------------
def _sigmoid_k(x):
    # sigmoid(x) = 0.5 * (1 + tanh(0.5 x))  -> single EUP op, full precision.
    return 0.5 * (jnp.tanh(0.5 * x) + 1.0)


def _softsign_k(x):
    # softsign(x) = x / (1 + |x|)   (division-free: EUP reciprocal)
    return x * pl.reciprocal(1.0 + jnp.abs(x), approx=False)


# ---------------------------------------------------------------------------
# Fused kernel factory: all layers + final Linear in one kernel body.
#
# Gate order (columns of the fused weight / bias): [forget, input, c_soft,
# e_pre, r_pre, out_base].  Fused-LHS row order: [x | c | h | e | r].
# ---------------------------------------------------------------------------
def make_fused_kernel(num_layers, hidden_size, output_size, slab_pad):
    H = hidden_size
    L = num_layers
    O = output_size
    SW = 2 * L * H + O  # useful slab width before padding

    def kernel(*refs):
        x_ref, h_ref, c_ref, e_ref, r_ref = refs[:5]
        layer_refs = refs[5:5 + 3 * L]           # per layer: (w, bias, wer)
        lin_w_ref = refs[5 + 3 * L]              # (L*H, O)
        lin_b_ref = refs[6 + 3 * L]              # (1, O)
        slab_ref = refs[7 + 3 * L]               # (B, slab_pad)

        def mm(a, b):
            return jnp.dot(a, b, preferred_element_type=jnp.float32)

        xin = x_ref[...]                         # (B, in_0)
        hs, cs = [], []
        for l in range(L):                       # static unroll (L is tiny)
            w_ref, b_ref, wer_ref = layer_refs[3 * l:3 * l + 3]
            c_old = c_ref[l]                     # (B, H)

            # one fused matmul for all six gate pre-activations
            lhs = jnp.concatenate(
                [xin, c_old, h_ref[l], e_ref[l], r_ref[l]], axis=-1)
            pre = mm(lhs, w_ref[...]) + b_ref[...]   # (B, GP) dense 128-multiple

            forget_gate = _sigmoid_k(pre[:, 0:H])
            input_gate = _sigmoid_k(pre[:, H:2 * H])
            c_new = forget_gate * c_old + input_gate * _softsign_k(pre[:, 2 * H:3 * H])
            e_new = _softsign_k(pre[:, 3 * H:4 * H])
            r_new = _softsign_k(pre[:, 4 * H:5 * H])

            # output-gate correction: one dot on [e_new | r_new]
            er = jnp.concatenate([e_new, r_new], axis=-1)          # (B, 2H)
            output_gate = _sigmoid_k(pre[:, 5 * H:6 * H] + mm(er, wer_ref[...]))
            h_new = output_gate * _softsign_k(c_new)

            hs.append(h_new)
            cs.append(c_new)
            xin = h_new                          # feeds the next layer

        # final Linear as ONE dot; h_cat is reused for the output slab
        h_cat = jnp.concatenate(hs, axis=-1)     # (B, L*H)
        c_cat = jnp.concatenate(cs, axis=-1)     # (B, L*H)
        out = mm(h_cat, lin_w_ref[...]) + lin_b_ref[...]           # (B, O)

        # single lane-dense slab: [h | c | linear_out | zero pad]
        pieces = [h_cat, c_cat, out]
        if slab_pad > SW:
            pieces.append(jnp.zeros((out.shape[0], slab_pad - SW), jnp.float32))
        slab_ref[...] = jnp.concatenate(pieces, axis=-1)

    return kernel


_VMEM = pl.BlockSpec(memory_space=pltpu.MemorySpace.VMEM)


# ---------------------------------------------------------------------------
# Forward wrapper: one pallas_call for the whole TraceLSTM.forward.
# h, c, e, r: (L, B, H);  x: (B, input_size).
# Returns (output, out_hn, out_cn) exactly like the PyTorch module.
# ---------------------------------------------------------------------------
def trace_lstm_forward(params, x, h, c, e, r):
    B = x.shape[0]
    L = len(params["layers"])
    H = h.shape[-1]
    O = params["lin_b"].shape[-1]
    SW = 2 * L * H + O
    SP = _round_up(SW, 128)

    inputs = [x, h, c, e, r]
    for lp in params["layers"]:
        inputs += [lp["w"], lp["bias"], lp["wer"]]
    inputs += [params["lin_w"], params["lin_b"]]

    slab = pl.pallas_call(
        make_fused_kernel(L, H, O, SP),
        out_shape=jax.ShapeDtypeStruct((B, SP), jnp.float32),
        in_specs=[_VMEM] * len(inputs),
        out_specs=_VMEM,
    )(*inputs)

    out = slab[:, 2 * L * H:2 * L * H + O]
    out_hn = slab[:, :L * H].reshape(B, L, H).transpose(1, 0, 2)        # (L, B, H)
    out_cn = slab[:, L * H:2 * L * H].reshape(B, L, H).transpose(1, 0, 2)
    return out, out_hn, out_cn


# ---------------------------------------------------------------------------
# Raw parameter init (mirrors TraceLSTMCell.__init__ / reset_parameters and
# nn.Linear: uniform(-1/sqrt(fan), 1/sqrt(fan)), PyTorch weight layouts).
# ---------------------------------------------------------------------------
def init_raw_params(key, input_size, hidden_size, num_layers, output_size):
    stdv = 1.0 / math.sqrt(hidden_size)

    def uni(k, shape, s):
        return jax.random.uniform(k, shape, jnp.float32, -s, s)

    cells = []
    for i in range(num_layers):
        in_sz = input_size if i == 0 else hidden_size
        key, *ks = jax.random.split(key, 9)
        cells.append(dict(
            w_ii=uni(ks[0], (in_sz, 6 * hidden_size), stdv),
            w_hh=uni(ks[1], (hidden_size, 6 * hidden_size), stdv),
            w_cc=uni(ks[2], (hidden_size, 3 * hidden_size), stdv),
            w_ee=uni(ks[3], (hidden_size, 4 * hidden_size), stdv),
            w_rr=uni(ks[4], (hidden_size, 4 * hidden_size), stdv),
            b_ih=uni(ks[5], (6 * hidden_size,), stdv),
            b_hh=uni(ks[6], (6 * hidden_size,), stdv),
            b_k=uni(ks[7], (hidden_size,), stdv),   # weight_aa: unused in forward
        ))
    key, kw, kb = jax.random.split(key, 3)
    lin_in = hidden_size * num_layers
    lstd = 1.0 / math.sqrt(lin_in)
    lin_w = uni(kw, (output_size, lin_in), lstd)     # (O, L*H) PyTorch layout
    lin_b = uni(kb, (output_size,), lstd)
    return dict(cells=cells, lin_w=lin_w, lin_b=lin_b, hidden_size=hidden_size)


# ---------------------------------------------------------------------------
# One-time host-side weight restacking / folding (hoisted out of the forward).
#
# Per layer:
#   w   : (in + 4H, GP)  fused gate weight, rows [x; c; h; e; r], columns are
#         the 6 gates [forget,input,c_soft,e_pre,r_pre,out_base] zero-padded
#         to GP = round_up(6H, 128).
#   bias: (1, GP)        folded b_ih + b_hh, same column layout.
#   wer : (2H, H)        output-gate correction on [e_new | r_new]
#                        (rows: w_cc[:,2H:3H]+w_ee[:,3H:4H] ; w_rr[:,3H:4H]).
# ---------------------------------------------------------------------------
def prepare_params(raw):
    H = raw["hidden_size"]
    L = len(raw["cells"])
    GP = _round_up(6 * H, 128)
    # weight_bias column used by each gate (wb[3] is shared by e & r; wb[5] is
    # never used — faithful to the reference forward).
    wb_col = [0, 1, 2, 3, 3, 4]

    layers = []
    for cell in raw["cells"]:
        w_ii, w_hh = cell["w_ii"], cell["w_hh"]
        w_cc, w_ee, w_rr = cell["w_cc"], cell["w_ee"], cell["w_rr"]
        in_sz = w_ii.shape[0]
        bias6 = cell["b_ih"] + cell["b_hh"]          # fold the two biases

        def col(w, k):
            return w[:, k * H:(k + 1) * H]

        zH = jnp.zeros((H, H), jnp.float32)

        x_blocks = [col(w_ii, k) for k in wb_col]                       # 6 x (in, H)
        c_blocks = [col(w_cc, 0), col(w_cc, 1), zH, zH, zH, zH]
        h_blocks = [col(w_hh, k) for k in wb_col]
        e_blocks = [col(w_ee, 0), col(w_ee, 1), zH, col(w_ee, 2), zH, zH]
        r_blocks = [col(w_rr, 0), col(w_rr, 1), zH, zH, col(w_rr, 2), zH]

        W = jnp.concatenate([
            jnp.concatenate(x_blocks, axis=1),       # (in, 6H)
            jnp.concatenate(c_blocks, axis=1),       # (H, 6H)
            jnp.concatenate(h_blocks, axis=1),       # (H, 6H)
            jnp.concatenate(e_blocks, axis=1),       # (H, 6H)
            jnp.concatenate(r_blocks, axis=1),       # (H, 6H)
        ], axis=0)                                   # (in + 4H, 6H)
        W = jnp.pad(W, ((0, 0), (0, GP - 6 * H)))    # pad gate axis to 128-mult

        bias = jnp.concatenate([bias6[k * H:(k + 1) * H] for k in wb_col])
        bias = jnp.pad(bias, (0, GP - 6 * H)).reshape(1, GP)

        # output-gate recurrent weights: fold w_cc[:,2H:3H] + w_ee[:,3H:4H]
        wer = jnp.concatenate([col(w_cc, 2) + col(w_ee, 3), col(w_rr, 3)], axis=0)

        layers.append(dict(w=W, bias=bias, wer=wer))

    lin_w = raw["lin_w"].T                           # (L*H, O)
    lin_b = raw["lin_b"].reshape(1, -1)              # (1, O)
    return dict(layers=layers, lin_w=lin_w, lin_b=lin_b)


# ---------------------------------------------------------------------------
# Pure-JAX reference (verbatim translation of the PyTorch forward) for checks.
# ---------------------------------------------------------------------------
def _ref_cell(x, h, c, e, r, p):
    H = h.shape[1]

    def sig(v):
        return 1.0 / (1.0 + jnp.exp(-v))

    def ss(v):
        return v / (1.0 + jnp.abs(v))

    bias = p["b_ih"] + p["b_hh"]
    wb = x @ p["w_ii"] + h @ p["w_hh"] + bias
    wbs = [wb[:, i * H:(i + 1) * H] for i in range(6)]
    wc = [p["w_cc"][:, i * H:(i + 1) * H] for i in range(3)]
    we = [p["w_ee"][:, i * H:(i + 1) * H] for i in range(4)]
    wr = [p["w_rr"][:, i * H:(i + 1) * H] for i in range(4)]
    fg = sig(wbs[0] + c @ wc[0] + e @ we[0] + r @ wr[0])
    ig = sig(wbs[1] + c @ wc[1] + e @ we[1] + r @ wr[1])
    c = fg * c + ig * ss(wbs[2])
    e = ss(wbs[3] + e @ we[2])
    r = ss(wbs[3] + r @ wr[2])
    og = sig(wbs[4] + e @ wc[2] + e @ we[3] + r @ wr[3])
    h = og * ss(c)
    return h, c, e, r


def _ref_forward(raw, x, h, c, e, r):
    temp = x
    hs, cs = [], []
    for layer, p in enumerate(raw["cells"]):
        hn, cn, en, rn = _ref_cell(temp, h[layer], c[layer], e[layer], r[layer], p)
        temp = hn
        hs.append(hn)
        cs.append(cn)
    out_hn = jnp.stack(hs, 0)
    out_cn = jnp.stack(cs, 0)
    flat = jnp.transpose(out_hn, (1, 0, 2)).reshape(x.shape[0], -1)
    out = flat @ raw["lin_w"].T + raw["lin_b"]
    return out, out_hn, out_cn


if __name__ == "__main__":
    input_size, hidden_size, num_layers, output_size, batch = 16, 32, 2, 8, 2

    key = jax.random.PRNGKey(0)
    kp, kx, kh, kc, ke, kr = jax.random.split(key, 6)
    raw = init_raw_params(kp, input_size, hidden_size, num_layers, output_size)
    params = prepare_params(raw)            # one-time host-side folding/stacking

    x = jax.random.normal(kx, (batch, input_size), jnp.float32)
    h = jax.random.normal(kh, (num_layers, batch, hidden_size), jnp.float32)
    c = jax.random.normal(kc, (num_layers, batch, hidden_size), jnp.float32)
    e = jax.random.normal(ke, (num_layers, batch, hidden_size), jnp.float32)
    r = jax.random.normal(kr, (num_layers, batch, hidden_size), jnp.float32)

    fwd = jax.jit(trace_lstm_forward)
    out, out_hn, out_cn = fwd(params, x, h, c, e, r)
    jax.block_until_ready((out, out_hn, out_cn))

    # sanity check vs. pure-JAX reference of the original formulation
    ro, rh, rc = _ref_forward(raw, x, h, c, e, r)
    assert out.shape == (batch, output_size)
    assert out_hn.shape == (num_layers, batch, hidden_size)
    assert out_cn.shape == (num_layers, batch, hidden_size)
    assert jnp.allclose(out, ro, atol=1e-4, rtol=1e-4)
    assert jnp.allclose(out_hn, rh, atol=1e-4, rtol=1e-4)
    assert jnp.allclose(out_cn, rc, atol=1e-4, rtol=1e-4)

    print("KERNEL_OK")
</pallas_src>

<mosaic_0001>
module attributes {stable_mosaic.version = 11 : i64} {
  func.func @kernel(%arg0: memref<2x16xf32, #tpu.memory_space<vmem>>, %arg1: memref<2x2x32xf32, #tpu.memory_space<vmem>>, %arg2: memref<2x2x32xf32, #tpu.memory_space<vmem>>, %arg3: memref<2x2x32xf32, #tpu.memory_space<vmem>>, %arg4: memref<2x2x32xf32, #tpu.memory_space<vmem>>, %arg5: memref<144x256xf32, #tpu.memory_space<vmem>>, %arg6: memref<1x256xf32, #tpu.memory_space<vmem>>, %arg7: memref<64x32xf32, #tpu.memory_space<vmem>>, %arg8: memref<160x256xf32, #tpu.memory_space<vmem>>, %arg9: memref<1x256xf32, #tpu.memory_space<vmem>>, %arg10: memref<64x32xf32, #tpu.memory_space<vmem>>, %arg11: memref<64x8xf32, #tpu.memory_space<vmem>>, %arg12: memref<1x8xf32, #tpu.memory_space<vmem>>, %arg13: memref<2x256xf32, #tpu.memory_space<vmem>>) attributes {dimension_semantics = [], scalar_prefetch = 0 : i64, scratch_operands = 0 : i64, tpu.core_type = #tpu.core_type<tc>} {
    %c0 = arith.constant 0 : index
    %c0_0 = arith.constant 0 : index
    %0 = vector.load %arg0[%c0, %c0_0] : memref<2x16xf32, #tpu.memory_space<vmem>>, vector<2x16xf32>
    %c0_1 = arith.constant 0 : index
    %c0_2 = arith.constant 0 : index
    %c0_3 = arith.constant 0 : index
    %1 = vector.load %arg2[%c0_1, %c0_2, %c0_3] : memref<2x2x32xf32, #tpu.memory_space<vmem>>, vector<1x2x32xf32>
    %2 = vector.shape_cast %1 : vector<1x2x32xf32> to vector<2x32xf32>
    %c0_4 = arith.constant 0 : index
    %c0_5 = arith.constant 0 : index
    %c0_6 = arith.constant 0 : index
    %3 = vector.load %arg1[%c0_4, %c0_5, %c0_6] : memref<2x2x32xf32, #tpu.memory_space<vmem>>, vector<1x2x32xf32>
    %4 = vector.shape_cast %3 : vector<1x2x32xf32> to vector<2x32xf32>
    %c0_7 = arith.constant 0 : index
    %c0_8 = arith.constant 0 : index
    %c0_9 = arith.constant 0 : index
    %5 = vector.load %arg3[%c0_7, %c0_8, %c0_9] : memref<2x2x32xf32, #tpu.memory_space<vmem>>, vector<1x2x32xf32>
    %6 = vector.shape_cast %5 : vector<1x2x32xf32> to vector<2x32xf32>
    %c0_10 = arith.constant 0 : index
    %c0_11 = arith.constant 0 : index
    %c0_12 = arith.constant 0 : index
    %7 = vector.load %arg4[%c0_10, %c0_11, %c0_12] : memref<2x2x32xf32, #tpu.memory_space<vmem>>, vector<1x2x32xf32>
    %8 = vector.shape_cast %7 : vector<1x2x32xf32> to vector<2x32xf32>
    %9 = tpu.concatenate %0, %2, %4, %6, %8 in 1 : vector<2x16xf32>, vector<2x32xf32>, vector<2x32xf32>, vector<2x32xf32>, vector<2x32xf32> -> vector<2x144xf32>
    %c0_13 = arith.constant 0 : index
    %c0_14 = arith.constant 0 : index
    %10 = vector.load %arg5[%c0_13, %c0_14] : memref<144x256xf32, #tpu.memory_space<vmem>>, vector<144x256xf32>
    %cst = arith.constant dense<0.000000e+00> : vector<2x256xf32>
    %11 = tpu.matmul %9, %10, %cst {dimension_numbers = #tpu.dot_dimension_numbers<[1], [0], [0], [1], [0, 0, 1, 1], [], []>} : vector<2x144xf32>, vector<144x256xf32>, vector<2x256xf32> -> vector<2x256xf32>
    %c0_15 = arith.constant 0 : index
    %c0_16 = arith.constant 0 : index
    %12 = vector.load %arg6[%c0_15, %c0_16] : memref<1x256xf32, #tpu.memory_space<vmem>>, vector<1x256xf32>
    %13 = vector.broadcast %12 : vector<1x256xf32> to vector<2x256xf32>
    %14 = arith.addf %11, %13 : vector<2x256xf32>
    %15 = vector.extract_strided_slice %14 {offsets = [0, 0], sizes = [2, 32], strides = [1, 1]} : vector<2x256xf32> to vector<2x32xf32>
    %cst_17 = arith.constant 5.000000e-01 : f32
    %16 = vector.broadcast %cst_17 : f32 to vector<2x32xf32>
    %17 = arith.mulf %16, %15 : vector<2x32xf32>
    %18 = math.tanh %17 : vector<2x32xf32>
    %cst_18 = arith.constant 1.000000e+00 : f32
    %19 = vector.broadcast %cst_18 : f32 to vector<2x32xf32>
    %20 = arith.addf %18, %19 : vector<2x32xf32>
    %cst_19 = arith.constant 5.000000e-01 : f32
    %21 = vector.broadcast %cst_19 : f32 to vector<2x32xf32>
    %22 = arith.mulf %21, %20 : vector<2x32xf32>
    %23 = vector.extract_strided_slice %14 {offsets = [0, 32], sizes = [2, 32], strides = [1, 1]} : vector<2x256xf32> to vector<2x32xf32>
    %cst_20 = arith.constant 5.000000e-01 : f32
    %24 = vector.broadcast %cst_20 : f32 to vector<2x32xf32>
    %25 = arith.mulf %24, %23 : vector<2x32xf32>
    %26 = math.tanh %25 : vector<2x32xf32>
    %cst_21 = arith.constant 1.000000e+00 : f32
    %27 = vector.broadcast %cst_21 : f32 to vector<2x32xf32>
    %28 = arith.addf %26, %27 : vector<2x32xf32>
    %cst_22 = arith.constant 5.000000e-01 : f32
    %29 = vector.broadcast %cst_22 : f32 to vector<2x32xf32>
    %30 = arith.mulf %29, %28 : vector<2x32xf32>
    %31 = arith.mulf %22, %2 : vector<2x32xf32>
    %32 = vector.extract_strided_slice %14 {offsets = [0, 64], sizes = [2, 32], strides = [1, 1]} : vector<2x256xf32> to vector<2x32xf32>
    %33 = math.absf %32 : vector<2x32xf32>
    %cst_23 = arith.constant 1.000000e+00 : f32
    %34 = vector.broadcast %cst_23 : f32 to vector<2x32xf32>
    %35 = arith.addf %34, %33 : vector<2x32xf32>
    %36 = tpu.reciprocal %35 : vector<2x32xf32> -> vector<2x32xf32>
    %37 = arith.mulf %32, %36 : vector<2x32xf32>
    %38 = arith.mulf %30, %37 : vector<2x32xf32>
    %39 = arith.addf %31, %38 : vector<2x32xf32>
    %40 = vector.extract_strided_slice %14 {offsets = [0, 96], sizes = [2, 32], strides = [1, 1]} : vector<2x256xf32> to vector<2x32xf32>
    %41 = math.absf %40 : vector<2x32xf32>
    %cst_24 = arith.constant 1.000000e+00 : f32
    %42 = vector.broadcast %cst_24 : f32 to vector<2x32xf32>
    %43 = arith.addf %42, %41 : vector<2x32xf32>
    %44 = tpu.reciprocal %43 : vector<2x32xf32> -> vector<2x32xf32>
    %45 = arith.mulf %40, %44 : vector<2x32xf32>
    %46 = vector.extract_strided_slice %14 {offsets = [0, 128], sizes = [2, 32], strides = [1, 1]} : vector<2x256xf32> to vector<2x32xf32>
    %47 = math.absf %46 : vector<2x32xf32>
    %cst_25 = arith.constant 1.000000e+00 : f32
    %48 = vector.broadcast %cst_25 : f32 to vector<2x32xf32>
    %49 = arith.addf %48, %47 : vector<2x32xf32>
    %50 = tpu.reciprocal %49 : vector<2x32xf32> -> vector<2x32xf32>
    %51 = arith.mulf %46, %50 : vector<2x32xf32>
    %52 = tpu.concatenate %45, %51 in 1 : vector<2x32xf32>, vector<2x32xf32> -> vector<2x64xf32>
    %53 = vector.extract_strided_slice %14 {offsets = [0, 160], sizes = [2, 32], strides = [1, 1]} : vector<2x256xf32> to vector<2x32xf32>
    %c0_26 = arith.constant 0 : index
    %c0_27 = arith.constant 0 : index
    %54 = vector.load %arg7[%c0_26, %c0_27] : memref<64x32xf32, #tpu.memory_space<vmem>>, vector<64x32xf32>
    %cst_28 = arith.constant dense<0.000000e+00> : vector<2x32xf32>
    %55 = tpu.matmul %52, %54, %cst_28 {dimension_numbers = #tpu.dot_dimension_numbers<[1], [0], [0], [1], [0, 0, 1, 1], [], []>} : vector<2x64xf32>, vector<64x32xf32>, vector<2x32xf32> -> vector<2x32xf32>
    %56 = arith.addf %53, %55 : vector<2x32xf32>
    %cst_29 = arith.constant 5.000000e-01 : f32
    %57 = vector.broadcast %cst_29 : f32 to vector<2x32xf32>
    %58 = arith.mulf %57, %56 : vector<2x32xf32>
    %59 = math.tanh %58 : vector<2x32xf32>
    %cst_30 = arith.constant 1.000000e+00 : f32
    %60 = vector.broadcast %cst_30 : f32 to vector<2x32xf32>
    %61 = arith.addf %59, %60 : vector<2x32xf32>
    %cst_31 = arith.constant 5.000000e-01 : f32
    %62 = vector.broadcast %cst_31 : f32 to vector<2x32xf32>
    %63 = arith.mulf %62, %61 : vector<2x32xf32>
    %64 = math.absf %39 : vector<2x32xf32>
    %cst_32 = arith.constant 1.000000e+00 : f32
    %65 = vector.broadcast %cst_32 : f32 to vector<2x32xf32>
    %66 = arith.addf %65, %64 : vector<2x32xf32>
    %67 = tpu.reciprocal %66 : vector<2x32xf32> -> vector<2x32xf32>
    %68 = arith.mulf %39, %67 : vector<2x32xf32>
    %69 = arith.mulf %63, %68 : vector<2x32xf32>
    %c1 = arith.constant 1 : index
    %c0_33 = arith.constant 0 : index
    %c0_34 = arith.constant 0 : index
    %70 = vector.load %arg2[%c1, %c0_33, %c0_34] : memref<2x2x32xf32, #tpu.memory_space<vmem>>, vector<1x2x32xf32>
    %71 = vector.shape_cast %70 : vector<1x2x32xf32> to vector<2x32xf32>
    %c1_35 = arith.constant 1 : index
    %c0_36 = arith.constant 0 : index
    %c0_37 = arith.constant 0 : index
    %72 = vector.load %arg1[%c1_35, %c0_36, %c0_37] : memref<2x2x32xf32, #tpu.memory_space<vmem>>, vector<1x2x32xf32>
    %73 = vector.shape_cast %72 : vector<1x2x32xf32> to vector<2x32xf32>
    %c1_38 = arith.constant 1 : index
    %c0_39 = arith.constant 0 : index
    %c0_40 = arith.constant 0 : index
    %74 = vector.load %arg3[%c1_38, %c0_39, %c0_40] : memref<2x2x32xf32, #tpu.memory_space<vmem>>, vector<1x2x32xf32>
    %75 = vector.shape_cast %74 : vector<1x2x32xf32> to vector<2x32xf32>
    %c1_41 = arith.constant 1 : index
    %c0_42 = arith.constant 0 : index
    %c0_43 = arith.constant 0 : index
    %76 = vector.load %arg4[%c1_41, %c0_42, %c0_43] : memref<2x2x32xf32, #tpu.memory_space<vmem>>, vector<1x2x32xf32>
    %77 = vector.shape_cast %76 : vector<1x2x32xf32> to vector<2x32xf32>
    %78 = tpu.concatenate %69, %71, %73, %75, %77 in 1 : vector<2x32xf32>, vector<2x32xf32>, vector<2x32xf32>, vector<2x32xf32>, vector<2x32xf32> -> vector<2x160xf32>
    %c0_44 = arith.constant 0 : index
    %c0_45 = arith.constant 0 : index
    %79 = vector.load %arg8[%c0_44, %c0_45] : memref<160x256xf32, #tpu.memory_space<vmem>>, vector<160x256xf32>
    %cst_46 = arith.constant dense<0.000000e+00> : vector<2x256xf32>
    %80 = tpu.matmul %78, %79, %cst_46 {dimension_numbers = #tpu.dot_dimension_numbers<[1], [0], [0], [1], [0, 0, 1, 1], [], []>} : vector<2x160xf32>, vector<160x256xf32>, vector<2x256xf32> -> vector<2x256xf32>
    %c0_47 = arith.constant 0 : index
    %c0_48 = arith.constant 0 : index
    %81 = vector.load %arg9[%c0_47, %c0_48] : memref<1x256xf32, #tpu.memory_space<vmem>>, vector<1x256xf32>
    %82 = vector.broadcast %81 : vector<1x256xf32> to vector<2x256xf32>
    %83 = arith.addf %80, %82 : vector<2x256xf32>
    %84 = vector.extract_strided_slice %83 {offsets = [0, 0], sizes = [2, 32], strides = [1, 1]} : vector<2x256xf32> to vector<2x32xf32>
    %cst_49 = arith.constant 5.000000e-01 : f32
    %85 = vector.broadcast %cst_49 : f32 to vector<2x32xf32>
    %86 = arith.mulf %85, %84 : vector<2x32xf32>
    %87 = math.tanh %86 : vector<2x32xf32>
    %cst_50 = arith.constant 1.000000e+00 : f32
    %88 = vector.broadcast %cst_50 : f32 to vector<2x32xf32>
    %89 = arith.addf %87, %88 : vector<2x32xf32>
    %cst_51 = arith.constant 5.000000e-01 : f32
    %90 = vector.broadcast %cst_51 : f32 to vector<2x32xf32>
    %91 = arith.mulf %90, %89 : vector<2x32xf32>
    %92 = vector.extract_strided_slice %83 {offsets = [0, 32], sizes = [2, 32], strides = [1, 1]} : vector<2x256xf32> to vector<2x32xf32>
    %cst_52 = arith.constant 5.000000e-01 : f32
    %93 = vector.broadcast %cst_52 : f32 to vector<2x32xf32>
    %94 = arith.mulf %93, %92 : vector<2x32xf32>
    %95 = math.tanh %94 : vector<2x32xf32>
    %cst_53 = arith.constant 1.000000e+00 : f32
    %96 = vector.broadcast %cst_53 : f32 to vector<2x32xf32>
    %97 = arith.addf %95, %96 : vector<2x32xf32>
    %cst_54 = arith.constant 5.000000e-01 : f32
    %98 = vector.broadcast %cst_54 : f32 to vector<2x32xf32>
    %99 = arith.mulf %98, %97 : vector<2x32xf32>
    %100 = arith.mulf %91, %71 : vector<2x32xf32>
    %101 = vector.extract_strided_slice %83 {offsets = [0, 64], sizes = [2, 32], strides = [1, 1]} : vector<2x256xf32> to vector<2x32xf32>
    %102 = math.absf %101 : vector<2x32xf32>
    %cst_55 = arith.constant 1.000000e+00 : f32
    %103 = vector.broadcast %cst_55 : f32 to vector<2x32xf32>
    %104 = arith.addf %103, %102 : vector<2x32xf32>
    %105 = tpu.reciprocal %104 : vector<2x32xf32> -> vector<2x32xf32>
    %106 = arith.mulf %101, %105 : vector<2x32xf32>
    %107 = arith.mulf %99, %106 : vector<2x32xf32>
    %108 = arith.addf %100, %107 : vector<2x32xf32>
    %109 = vector.extract_strided_slice %83 {offsets = [0, 96], sizes = [2, 32], strides = [1, 1]} : vector<2x256xf32> to vector<2x32xf32>
    %110 = math.absf %109 : vector<2x32xf32>
    %cst_56 = arith.constant 1.000000e+00 : f32
    %111 = vector.broadcast %cst_56 : f32 to vector<2x32xf32>
    %112 = arith.addf %111, %110 : vector<2x32xf32>
    %113 = tpu.reciprocal %112 : vector<2x32xf32> -> vector<2x32xf32>
    %114 = arith.mulf %109, %113 : vector<2x32xf32>
    %115 = vector.extract_strided_slice %83 {offsets = [0, 128], sizes = [2, 32], strides = [1, 1]} : vector<2x256xf32> to vector<2x32xf32>
    %116 = math.absf %115 : vector<2x32xf32>
    %cst_57 = arith.constant 1.000000e+00 : f32
    %117 = vector.broadcast %cst_57 : f32 to vector<2x32xf32>
    %118 = arith.addf %117, %116 : vector<2x32xf32>
    %119 = tpu.reciprocal %118 : vector<2x32xf32> -> vector<2x32xf32>
    %120 = arith.mulf %115, %119 : vector<2x32xf32>
    %121 = tpu.concatenate %114, %120 in 1 : vector<2x32xf32>, vector<2x32xf32> -> vector<2x64xf32>
    %122 = vector.extract_strided_slice %83 {offsets = [0, 160], sizes = [2, 32], strides = [1, 1]} : vector<2x256xf32> to vector<2x32xf32>
    %c0_58 = arith.constant 0 : index
    %c0_59 = arith.constant 0 : index
    %123 = vector.load %arg10[%c0_58, %c0_59] : memref<64x32xf32, #tpu.memory_space<vmem>>, vector<64x32xf32>
    %cst_60 = arith.constant dense<0.000000e+00> : vector<2x32xf32>
    %124 = tpu.matmul %121, %123, %cst_60 {dimension_numbers = #tpu.dot_dimension_numbers<[1], [0], [0], [1], [0, 0, 1, 1], [], []>} : vector<2x64xf32>, vector<64x32xf32>, vector<2x32xf32> -> vector<2x32xf32>
    %125 = arith.addf %122, %124 : vector<2x32xf32>
    %cst_61 = arith.constant 5.000000e-01 : f32
    %126 = vector.broadcast %cst_61 : f32 to vector<2x32xf32>
    %127 = arith.mulf %126, %125 : vector<2x32xf32>
    %128 = math.tanh %127 : vector<2x32xf32>
    %cst_62 = arith.constant 1.000000e+00 : f32
    %129 = vector.broadcast %cst_62 : f32 to vector<2x32xf32>
    %130 = arith.addf %128, %129 : vector<2x32xf32>
    %cst_63 = arith.constant 5.000000e-01 : f32
    %131 = vector.broadcast %cst_63 : f32 to vector<2x32xf32>
    %132 = arith.mulf %131, %130 : vector<2x32xf32>
    %133 = math.absf %108 : vector<2x32xf32>
    %cst_64 = arith.constant 1.000000e+00 : f32
    %134 = vector.broadcast %cst_64 : f32 to vector<2x32xf32>
    %135 = arith.addf %134, %133 : vector<2x32xf32>
    %136 = tpu.reciprocal %135 : vector<2x32xf32> -> vector<2x32xf32>
    %137 = arith.mulf %108, %136 : vector<2x32xf32>
    %138 = arith.mulf %132, %137 : vector<2x32xf32>
    %139 = tpu.concatenate %69, %138 in 1 : vector<2x32xf32>, vector<2x32xf32> -> vector<2x64xf32>
    %140 = tpu.concatenate %39, %108 in 1 : vector<2x32xf32>, vector<2x32xf32> -> vector<2x64xf32>
    %c0_65 = arith.constant 0 : index
    %c0_66 = arith.constant 0 : index
    %141 = vector.load %arg11[%c0_65, %c0_66] : memref<64x8xf32, #tpu.memory_space<vmem>>, vector<64x8xf32>
    %cst_67 = arith.constant dense<0.000000e+00> : vector<2x8xf32>
    %142 = tpu.matmul %139, %141, %cst_67 {dimension_numbers = #tpu.dot_dimension_numbers<[1], [0], [0], [1], [0, 0, 1, 1], [], []>} : vector<2x64xf32>, vector<64x8xf32>, vector<2x8xf32> -> vector<2x8xf32>
    %c0_68 = arith.constant 0 : index
    %c0_69 = arith.constant 0 : index
    %143 = vector.load %arg12[%c0_68, %c0_69] : memref<1x8xf32, #tpu.memory_space<vmem>>, vector<1x8xf32>
    %144 = vector.broadcast %143 : vector<1x8xf32> to vector<2x8xf32>
    %145 = arith.addf %142, %144 : vector<2x8xf32>
    %cst_70 = arith.constant 0.000000e+00 : f32
    %146 = vector.broadcast %cst_70 : f32 to vector<2x120xf32>
    %147 = tpu.concatenate %139, %140, %145, %146 in 1 : vector<2x64xf32>, vector<2x64xf32>, vector<2x8xf32>, vector<2x120xf32> -> vector<2x256xf32>
    %c0_71 = arith.constant 0 : index
    %c0_72 = arith.constant 0 : index
    %148 = vector.load %arg13[%c0_71, %c0_72] : memref<2x256xf32, #tpu.memory_space<vmem>>, vector<2x256xf32>
    tpu.vector_store %arg13[%c0_71, %c0_72], %147 {strides = array<i32>} : memref<2x256xf32, #tpu.memory_space<vmem>>, vector<2x256xf32>,
    return
  }
}

</mosaic_0001>

<llo_original>
// kernel: trace_lstm_forward.1
$region0: #{trace_lstm_forward.1}
  #allocation0 [shape = 'u32[]', space=smem, size = 0x4, offset = 0x4, fixed_abs, tag = 'smem constant byte address 0x4 - core index']
  #allocation1 [shape = 'u32[144,128]{1,0:T(1,128)}', space=vmem, size = 0x12000, scoped, tag = 'internal scratch']
  %s0 = inlined_call_operand.vmem [shape: f32[2,16], index: 0, kind: input, shape index: {}]
  %s1 = inlined_call_operand.vmem [shape: f32[2,2,32], index: 1, kind: input, shape index: {}]
  %s2 = inlined_call_operand.vmem [shape: f32[2,2,32], index: 2, kind: input, shape index: {}]
  %s3 = inlined_call_operand.vmem [shape: f32[2,2,32], index: 3, kind: input, shape index: {}]
  %s4 = inlined_call_operand.vmem [shape: f32[2,2,32], index: 4, kind: input, shape index: {}]
  %s5 = inlined_call_operand.hbm [shape: f32[144,256], index: 5, kind: input, shape index: {}]
  %s6 = inlined_call_operand.vmem [shape: f32[1,256], index: 6, kind: input, shape index: {}]
  %s7 = inlined_call_operand.vmem [shape: f32[64,32], index: 7, kind: input, shape index: {}]
  %s8 = inlined_call_operand.hbm [shape: f32[160,256], index: 8, kind: input, shape index: {}]
  %s9 = inlined_call_operand.vmem [shape: f32[1,256], index: 9, kind: input, shape index: {}]
  %s10 = inlined_call_operand.vmem [shape: f32[64,32], index: 10, kind: input, shape index: {}]
  %s11 = inlined_call_operand.vmem [shape: f32[64,8], index: 11, kind: input, shape index: {}]
  %s12 = inlined_call_operand.vmem [shape: f32[1,8], index: 12, kind: input, shape index: {}]
  %s13 = inlined_call_operand.vmem [shape: f32[2,256], index: 13, kind: output, shape index: {}]
  %s14 = sld [smem:[#allocation0]]
  $region70: #{trace_lstm_forward.1} parent=0
    _
  %s16 = ssub.s32 1, %s14
  %s17 = scalar_select 0, %s16, %s14
  $region1: #{trace_lstm_forward.1} parent=0
    #allocation2 [shape = 'u8[147456]{0}', space=vmem, size = 0x24000, scoped, tag = 'input window, operand 5, single buffered']
    #allocation3 [shape = 's32[1]{0}', space=sflag, size = 0x4, scoped, tag = 'scoped memory for trace_lstm_forward.1']
    #allocation4 [shape = 'u8[163840]{0}', space=vmem, size = 0x28000, scoped, tag = 'input window, operand 8, single buffered']
    #allocation5 [shape = 's32[1]{0}', space=sflag, size = 0x4, scoped, tag = 'scoped memory for trace_lstm_forward.1']
    %18 = vsyncpa [#allocation3], 0
    %19 = vsyncpa [#allocation5], 0
    // Predicated region
    $region2: #{trace_lstm_forward.1} parent=1 // pred_check
      _
    $region3: #{trace_lstm_forward.1} parent=1 // pred_check_branch
      %21 = sbr.rel (0) target = $region5
    $region4: #{trace_lstm_forward.1} parent=1 // pred_region
      _
    $region5: #{trace_lstm_forward.1} parent=1 // pred_fallthru
      _
    // Predicated region
    $region6: #{trace_lstm_forward.1} parent=1 // pred_check
      _
    $region7: #{trace_lstm_forward.1} parent=1 // pred_check_branch
      %23 = sbr.rel (0) target = $region9
    $region8: #{trace_lstm_forward.1} parent=1 // pred_region
      _
    $region9: #{trace_lstm_forward.1} parent=1 // pred_fallthru
      _
    // Predicated region
    $region10: #{trace_lstm_forward.1} parent=1 // pred_check
      _
    $region11: #{trace_lstm_forward.1} parent=1 // pred_check_branch
      %25 = sbr.rel (0) target = $region13
    $region12: #{trace_lstm_forward.1} parent=1 // pred_region
      _
    $region13: #{trace_lstm_forward.1} parent=1 // pred_fallthru
      _
    // Predicated region
    $region14: #{trace_lstm_forward.1} parent=1 // pred_check
      _
    $region15: #{trace_lstm_forward.1} parent=1 // pred_check_branch
      %27 = sbr.rel (0) target = $region17
    $region16: #{trace_lstm_forward.1} parent=1 // pred_region
      _
    $region17: #{trace_lstm_forward.1} parent=1 // pred_fallthru
      _
    // Predicated region
    $region18: #{trace_lstm_forward.1} parent=1 // pred_check
      _
    $region19: #{trace_lstm_forward.1} parent=1 // pred_check_branch
      %29 = sbr.rel (0) target = $region21
    $region20: #{trace_lstm_forward.1} parent=1 // pred_region
      _
    $region21: #{trace_lstm_forward.1} parent=1 // pred_fallthru
      _
    // Predicated region
    $region22: #{trace_lstm_forward.1} parent=1 // pred_check
      _
    $region23: #{trace_lstm_forward.1} parent=1 // pred_check_branch
      %31 = sbr.rel (0) target = $region25
    $region24: #{trace_lstm_forward.1} parent=1 // pred_region
      %s33 = ssub.s32 4608, 4608
      %34 = vsyncadd [#allocation3], %s33
      %s35 = sshll.u32 [#allocation2], 4
      %s36 = int_to_ptr.vmem [resolvable:$true] %s35
      %41 = dma.hbm_to_vmem [thread:$0]  %s5, 4608, %s36, [#allocation3], 256, 256, 16
    $region25: #{trace_lstm_forward.1} parent=1 // pred_fallthru
      _
    // Predicated region
    $region26: #{trace_lstm_forward.1} parent=1 // pred_check
      _
    $region27: #{trace_lstm_forward.1} parent=1 // pred_check_branch
      %43 = sbr.rel (0) target = $region29
    $region28: #{trace_lstm_forward.1} parent=1 // pred_region
      _
    $region29: #{trace_lstm_forward.1} parent=1 // pred_fallthru
      _
    // Predicated region
    $region30: #{trace_lstm_forward.1} parent=1 // pred_check
      _
    $region31: #{trace_lstm_forward.1} parent=1 // pred_check_branch
      %45 = sbr.rel (0) target = $region33
    $region32: #{trace_lstm_forward.1} parent=1 // pred_region
      _
    $region33: #{trace_lstm_forward.1} parent=1 // pred_fallthru
      _
    // Predicated region
    $region34: #{trace_lstm_forward.1} parent=1 // pred_check
      _
    $region35: #{trace_lstm_forward.1} parent=1 // pred_check_branch
      %47 = sbr.rel (0) target = $region37
    $region36: #{trace_lstm_forward.1} parent=1 // pred_region
      %s49 = ssub.s32 5120, 5120
      %50 = vsyncadd [#allocation5], %s49
      %s51 = sshll.u32 [#allocation4], 4
      %s52 = int_to_ptr.vmem [resolvable:$true] %s51
      %57 = dma.hbm_to_vmem [thread:$0]  %s8, 5120, %s52, [#allocation5], 256, 256, 16
    $region37: #{trace_lstm_forward.1} parent=1 // pred_fallthru
      _
    // Predicated region
    $region38: #{trace_lstm_forward.1} parent=1 // pred_check
      _
    $region39: #{trace_lstm_forward.1} parent=1 // pred_check_branch
      %59 = sbr.rel (0) target = $region41
    $region40: #{trace_lstm_forward.1} parent=1 // pred_region
      _
    $region41: #{trace_lstm_forward.1} parent=1 // pred_fallthru
      _
    // Predicated region
    $region42: #{trace_lstm_forward.1} parent=1 // pred_check
      _
    $region43: #{trace_lstm_forward.1} parent=1 // pred_check_branch
      %61 = sbr.rel (0) target = $region45
    $region44: #{trace_lstm_forward.1} parent=1 // pred_region
      _
    $region45: #{trace_lstm_forward.1} parent=1 // pred_fallthru
      _
    // Predicated region
    $region46: #{trace_lstm_forward.1} parent=1 // pred_check
      _
    $region47: #{trace_lstm_forward.1} parent=1 // pred_check_branch
      %63 = sbr.rel (0) target = $region49
    $region48: #{trace_lstm_forward.1} parent=1 // pred_region
      _
    $region49: #{trace_lstm_forward.1} parent=1 // pred_fallthru
      _
    // Predicated region
    $region50: #{trace_lstm_forward.1} parent=1 // pred_check
      _
    $region51: #{trace_lstm_forward.1} parent=1 // pred_check_branch
      %65 = sbr.rel (0) target = $region53
    $region52: #{trace_lstm_forward.1} parent=1 // pred_region
      _
    $region53: #{trace_lstm_forward.1} parent=1 // pred_fallthru
      _
    // Predicated region
    $region54: #{trace_lstm_forward.1} parent=1 // pred_check
      _
    $region55: #{trace_lstm_forward.1} parent=1 // pred_check_branch
      %67 = sbr.rel (0) target = $region57
    $region56: #{trace_lstm_forward.1} parent=1 // pred_region
      %68 = dma.done [#allocation3], 4608
    $region57: #{trace_lstm_forward.1} parent=1 // pred_fallthru
      _
    // Predicated region
    $region58: #{trace_lstm_forward.1} parent=1 // pred_check
      _
    $region59: #{trace_lstm_forward.1} parent=1 // pred_check_branch
      %70 = sbr.rel (0) target = $region61
    $region60: #{trace_lstm_forward.1} parent=1 // pred_region
      %71 = dma.done [#allocation5], 5120
    $region61: #{trace_lstm_forward.1} parent=1 // pred_fallthru
      _
    %v72 = vld [vmem:[%s0] sm:$0x3]
    %v73 = vld [vmem:[%s2] sm:$0x3]
    %v74 = vld [vmem:[%s1] sm:$0x3]
    %v75 = vld [vmem:[%s3] sm:$0x3]
    %v76 = vld [vmem:[%s4] sm:$0x3]
    %78 = vrot.lane.b32.xlu0 %v73, 16
    %v79 = vpop.permute.xlu0 %78
    %82 = vrot.lane.b32.xlu0 %v74, 48
    %v83 = vpop.permute.xlu0 %82
    %86 = vrot.lane.b32.xlu0 %v75, 80
    %v87 = vpop.permute.xlu0 %86
    %90 = vrot.lane.b32.xlu0 %v76, 112
    %v91 = vpop.permute.xlu0 %90
    %vm93 = vcmask 130048
    %v94 = vsel %vm93, %v72, %v79
    %vm95 = vcmask 392192
    %v96 = vsel %vm95, %v94, %v83
    %vm97 = vcmask 654336
    %v98 = vsel %vm97, %v96, %v87
    %vm99 = vcmask 916480
    %v100 = vsel %vm99, %v98, %v91
    %v101 = vld [vmem:[#allocation2] sm:$0xff]
    %v102 = vld [vmem:[#allocation2 + $0x8] sm:$0xff]
    %v103 = vld [vmem:[#allocation2 + $0x10] sm:$0xff]
    %v104 = vld [vmem:[#allocation2 + $0x18] sm:$0xff]
    %v105 = vld [vmem:[#allocation2 + $0x20] sm:$0xff]
    %v106 = vld [vmem:[#allocation2 + $0x28] sm:$0xff]
    %v107 = vld [vmem:[#allocation2 + $0x30] sm:$0xff]
    %v108 = vld [vmem:[#allocation2 + $0x38] sm:$0xff]
    %v109 = vld [vmem:[#allocation2 + $0x40] sm:$0xff]
    %v110 = vld [vmem:[#allocation2 + $0x48] sm:$0xff]
    %v111 = vld [vmem:[#allocation2 + $0x50] sm:$0xff]
    %v112 = vld [vmem:[#allocation2 + $0x58] sm:$0xff]
    %v113 = vld [vmem:[#allocation2 + $0x60] sm:$0xff]
    %v114 = vld [vmem:[#allocation2 + $0x68] sm:$0xff]
    %v115 = vld [vmem:[#allocation2 + $0x70] sm:$0xff]
    %v116 = vld [vmem:[#allocation2 + $0x78] sm:$0xff]
    %v117 = vld [vmem:[#allocation2 + $0x80] sm:$0xff]
    %v118 = vld [vmem:[#allocation2 + $0x88] sm:$0xff]
    %v119 = vld [vmem:[#allocation2 + $0x90] sm:$0xff]
    %v120 = vld [vmem:[#allocation2 + $0x98] sm:$0xff]
    %v121 = vld [vmem:[#allocation2 + $0xa0] sm:$0xff]
    %v122 = vld [vmem:[#allocation2 + $0xa8] sm:$0xff]
    %v123 = vld [vmem:[#allocation2 + $0xb0] sm:$0xff]
    %v124 = vld [vmem:[#allocation2 + $0xb8] sm:$0xff]
    %v125 = vld [vmem:[#allocation2 + $0xc0] sm:$0xff]
    %v126 = vld [vmem:[#allocation2 + $0xc8] sm:$0xff]
    %v127 = vld [vmem:[#allocation2 + $0xd0] sm:$0xff]
    %v128 = vld [vmem:[#allocation2 + $0xd8] sm:$0xff]
    %v129 = vld [vmem:[#allocation2 + $0xe0] sm:$0xff]
    %v130 = vld [vmem:[#allocation2 + $0xe8] sm:$0xff]
    %v131 = vld [vmem:[#allocation2 + $0xf0] sm:$0xff]
    %v132 = vld [vmem:[#allocation2 + $0xf8] sm:$0xff]
    %v133 = vld [vmem:[#allocation2 + $0x100] sm:$0xff]
    %v134 = vld [vmem:[#allocation2 + $0x108] sm:$0xff]
    %v135 = vld [vmem:[#allocation2 + $0x110] sm:$0xff]
    %v136 = vld [vmem:[#allocation2 + $0x118] sm:$0xff]
    %v137 = vld [vmem:[%s6] sm:$0x3]
    %v139 = vlaneseq
    %v140 = vshrl.u32 %v139, 7
    %v141 = vsub.s32 0, %v140
    %v142 = vrot.slane %v137, %v141
    %v143 = vlaneseq
    %v144 = vshrl.u32 %v143, 7
    %v145 = vsub.s32 1, %v144
    %v146 = vrot.slane %v137, %v145
    %v149 = vsel %vm93, %v91, 0
    %151 = vmatprep.subr.mxu0 %v102
    %152 = vmatpush1.msra.mxu0 %v101
    %153 = vmatprep.subr.mxu0 %v104
    %154 = vmatpush1.msra.mxu0 %v103
    %155 = vmatprep.subr.mxu0 %v106
    %156 = vmatpush1.msra.mxu0 %v105
    %157 = vmatprep.subr.mxu0 %v108
    %158 = vmatpush1.msra.mxu0 %v107
    %159 = vmatprep.subr.mxu0 %v110
    %160 = vmatpush1.msra.mxu0 %v109
    %161 = vmatprep.subr.mxu0 %v112
    %162 = vmatpush1.msra.mxu0 %v111
    %163 = vmatprep.subr.mxu0 %v114
    %164 = vmatpush1.msra.mxu0 %v113
    %165 = vmatprep.subr.mxu0 %v116
    %166 = vmatpush1.msra.mxu0 %v115
    %167 = vmatprep.subr.mxu0 %v118
    %168 = vmatpush1.msra.mxu0 %v117
    %169 = vmatprep.subr.mxu0 %v120
    %170 = vmatpush1.msra.mxu0 %v119
    %171 = vmatprep.subr.mxu0 %v122
    %172 = vmatpush1.msra.mxu0 %v121
    %173 = vmatprep.subr.mxu0 %v124
    %174 = vmatpush1.msra.mxu0 %v123
    %175 = vmatprep.subr.mxu0 %v126
    %176 = vmatpush1.msra.mxu0 %v125
    %177 = vmatprep.subr.mxu0 %v128
    %178 = vmatpush1.msra.mxu0 %v127
    %179 = vmatprep.subr.mxu0 %v130
    %180 = vmatpush1.msra.mxu0 %v129
    %181 = vmatprep.subr.mxu0 %v132
    %182 = vmatpush1.msra.mxu0 %v131
    %183 = vmatprep.subr.mxu0 %v134
    %184 = vmatpush1.msra.mxu0 %v133
    %185 = vmatprep.subr.mxu0 %v136
    %186 = vmatpush1.msra.mxu0 %v135
    %187 = vmatprep.subr.mxu0 0.0
    %188 = vmatpush1.msra.mxu0 0.0
    %189 = vmatprep.subr.mxu0 0.0
    %190 = vmatpush1.msra.mxu0 0.0
    %191 = vmatprep.subr.mxu0 0.0
    %192 = vmatpush1.msra.mxu0 0.0
    %193 = vmatprep.subr.mxu0 0.0
    %194 = vmatpush1.msra.mxu0 0.0
    %195 = vmatprep.subr.mxu0 0.0
    %196 = vmatpush1.msra.mxu0 0.0
    %197 = vmatprep.subr.mxu0 0.0
    %198 = vmatpush1.msra.mxu0 0.0
    %199 = vmatprep.subr.mxu0 0.0
    %200 = vmatpush1.msra.mxu0 0.0
    %201 = vmatprep.subr.mxu0 0.0
    %202 = vmatpush1.msra.mxu0 0.0
    %203 = vmatprep.subr.mxu0 0.0
    %204 = vmatpush1.msra.mxu0 0.0
    %205 = vmatprep.subr.mxu0 0.0
    %206 = vmatpush1.msra.mxu0 0.0
    %207 = vmatprep.subr.mxu0 0.0
    %208 = vmatpush1.msra.mxu0 0.0
    %209 = vmatprep.subr.mxu0 0.0
    %210 = vmatpush1.msra.mxu0 0.0
    %211 = vmatprep.subr.mxu0 0.0
    %212 = vmatpush1.msra.mxu0 0.0
    %213 = vmatprep.subr.mxu0 0.0
    %214 = vmatpush1.msra.mxu0 0.0
    %215 = vmatprep.mubr.f32.mxu0 %v149
    %216 = vmatmul.mubr.f32.gmra.mrb[0].mxu0 %v100
    %v217 = vpop.f32.mrb[0].mxu0
    %v218 = vadd.f32 %v142, %v217
    %v219 = vpop.f32.mrb[0].mxu0
    %v220 = vadd.f32 %v146, %v219
    %221 = vdwg.mxu0
    %v222 = vmul.f32 %v218, 0.5
    %v223 = vtanh.pop %v222
    %v224 = vadd.f32 %v223, 1.0
    %v225 = vmul.f32 %v224, 0.5
    %v226 = vmul.f32 %v225, %v73
    %v227 = vand.u32 2147483647, %v218
    %v228 = vadd.f32 %v227, 1.0
    %v229 = vrcp.pop %v228
    %v230 = vmul.f32 %v218, %v229
    %232 = vrot.lane.b32.xlu0 %v230, 96
    %v233 = vpop.permute.xlu0 %232
    %v235 = vmul.f32 %v225, %v233
    %237 = vrot.lane.b32.xlu0 %v235, 96
    %v238 = vpop.permute.xlu0 %237
    %v240 = vadd.f32 %v226, %v238
    %v241 = vand.u32 2147483647, %v220
    %v242 = vadd.f32 %v241, 1.0
    %v243 = vrcp.pop %v242
    %v244 = vmul.f32 %v220, %v243
    %245 = vrot.lane.b32.xlu0 %v230, 32
    %v246 = vpop.permute.xlu0 %245
    %249 = vrot.lane.b32.xlu0 %v244, 32
    %v250 = vpop.permute.xlu0 %249
    %vm252 = vcmask 261120
    %v253 = vsel %vm252, %v246, %v250
    %v254 = vld [vmem:[%s7] sm:$0xff]
    %v255 = vld [vmem:[%s7 + $0x8] sm:$0xff]
    %v256 = vld [vmem:[%s7 + $0x10] sm:$0xff]
    %v257 = vld [vmem:[%s7 + $0x18] sm:$0xff]
    %v258 = vld [vmem:[%s7 + $0x20] sm:$0xff]
    %v259 = vld [vmem:[%s7 + $0x28] sm:$0xff]
    %v260 = vld [vmem:[%s7 + $0x30] sm:$0xff]
    %v261 = vld [vmem:[%s7 + $0x38] sm:$0xff]
    %vm262 = vcmask 523264
    %v264 = vsel %vm262, %v253, 0
    %266 = vmatprep.subr.mxu0 0.0
    %267 = vmatpush1.msra.mxu0 %v254
    %268 = vmatprep.subr.mxu0 0.0
    %269 = vmatpush1.msra.mxu0 %v255
    %270 = vmatprep.subr.mxu0 0.0
    %271 = vmatpush1.msra.mxu0 %v256
    %272 = vmatprep.subr.mxu0 0.0
    %273 = vmatpush1.msra.mxu0 %v257
    %274 = vmatprep.subr.mxu0 0.0
    %275 = vmatpush1.msra.mxu0 %v258
    %276 = vmatprep.subr.mxu0 0.0
    %277 = vmatpush1.msra.mxu0 %v259
    %278 = vmatprep.subr.mxu0 0.0
    %279 = vmatpush1.msra.mxu0 %v260
    %280 = vmatprep.subr.mxu0 0.0
    %281 = vmatpush1.msra.mxu0 %v261
    %282 = vmatprep.subr.mxu0 0.0
    %283 = vmatpush1.msra.mxu0 0.0
    %284 = vmatprep.subr.mxu0 0.0
    %285 = vmatpush1.msra.mxu0 0.0
    %286 = vmatprep.subr.mxu0 0.0
    %287 = vmatpush1.msra.mxu0 0.0
    %288 = vmatprep.subr.mxu0 0.0
    %289 = vmatpush1.msra.mxu0 0.0
    %290 = vmatprep.subr.mxu0 0.0
    %291 = vmatpush1.msra.mxu0 0.0
    %292 = vmatprep.subr.mxu0 0.0
    %293 = vmatpush1.msra.mxu0 0.0
    %294 = vmatprep.subr.mxu0 0.0
    %295 = vmatpush1.msra.mxu0 0.0
    %296 = vmatprep.subr.mxu0 0.0
    %297 = vmatpush1.msra.mxu0 0.0
    %298 = vmatprep.subr.mxu0 0.0
    %299 = vmatpush1.msra.mxu0 0.0
    %300 = vmatprep.subr.mxu0 0.0
    %301 = vmatpush1.msra.mxu0 0.0
    %302 = vmatprep.subr.mxu0 0.0
    %303 = vmatpush1.msra.mxu0 0.0
    %304 = vmatprep.subr.mxu0 0.0
    %305 = vmatpush1.msra.mxu0 0.0
    %306 = vmatprep.subr.mxu0 0.0
    %307 = vmatpush1.msra.mxu0 0.0
    %308 = vmatprep.subr.mxu0 0.0
    %309 = vmatpush1.msra.mxu0 0.0
    %310 = vmatprep.subr.mxu0 0.0
    %311 = vmatpush1.msra.mxu0 0.0
    %312 = vmatprep.subr.mxu0 0.0
    %313 = vmatpush1.msra.mxu0 0.0
    %314 = vmatprep.subr.mxu0 0.0
    %315 = vmatpush1.msra.mxu0 0.0
    %316 = vmatprep.subr.mxu0 0.0
    %317 = vmatpush1.msra.mxu0 0.0
    %318 = vmatprep.subr.mxu0 0.0
    %319 = vmatpush1.msra.mxu0 0.0
    %320 = vmatprep.subr.mxu0 0.0
    %321 = vmatpush1.msra.mxu0 0.0
    %322 = vmatprep.subr.mxu0 0.0
    %323 = vmatpush1.msra.mxu0 0.0
    %324 = vmatprep.subr.mxu0 0.0
    %325 = vmatpush1.msra.mxu0 0.0
    %326 = vmatprep.subr.mxu0 0.0
    %327 = vmatpush1.msra.mxu0 0.0
    %328 = vmatprep.subr.mxu0 0.0
    %329 = vmatpush1.msra.mxu0 0.0
    %330 = vmatprep.mubr.f32.mxu0 0.0
    %331 = vmatmul.mubr.f32.gmra.mrb[0].mxu0 %v264
    %v332 = vpop.f32.mrb[0].mxu0
    %v333 = vadd.f32 0.0, %v332
    %v334 = vpop.f32.mrb[0].mxu0
    %335 = vdwg.mxu0
    %337 = vrot.lane.b32.xlu0 %v333, 32
    %v338 = vpop.permute.xlu0 %337
    %v340 = vadd.f32 %v220, %v338
    %v341 = vmul.f32 %v340, 0.5
    %v342 = vtanh.pop %v341
    %v343 = vadd.f32 %v342, 1.0
    %v344 = vmul.f32 %v343, 0.5
    %v345 = vand.u32 2147483647, %v240
    %v346 = vadd.f32 %v345, 1.0
    %v347 = vrcp.pop %v346
    %v348 = vmul.f32 %v240, %v347
    %350 = vrot.lane.b32.xlu0 %v348, 32
    %v351 = vpop.permute.xlu0 %350
    %v353 = vmul.f32 %v344, %v351
    %s354 = scalar_lea.vmem %s2, 2
    %v355 = vld [vmem:[%s354] sm:$0x3]
    %s356 = scalar_lea.vmem %s1, 2
    %v357 = vld [vmem:[%s356] sm:$0x3]
    %s358 = scalar_lea.vmem %s3, 2
    %v359 = vld [vmem:[%s358] sm:$0x3]
    %s360 = scalar_lea.vmem %s4, 2
    %v361 = vld [vmem:[%s360] sm:$0x3]
    %363 = vrot.lane.b32.xlu0 %v353, 96
    %v364 = vpop.permute.xlu0 %363
    %367 = vrot.lane.b32.xlu0 %v355, 32
    %v368 = vpop.permute.xlu0 %367
    %371 = vrot.lane.b32.xlu0 %v357, 64
    %v372 = vpop.permute.xlu0 %371
    %375 = vrot.lane.b32.xlu0 %v359, 96
    %v376 = vpop.permute.xlu0 %375
    %v378 = vsel %vm252, %v364, %v368
    %v379 = vsel %vm262, %v378, %v372
    %vm380 = vcmask 785408
    %v381 = vsel %vm380, %v379, %v376
    %v382 = vld [vmem:[#allocation4] sm:$0xff]
    %v383 = vld [vmem:[#allocation4 + $0x8] sm:$0xff]
    %v384 = vld [vmem:[#allocation4 + $0x10] sm:$0xff]
    %v385 = vld [vmem:[#allocation4 + $0x18] sm:$0xff]
    %v386 = vld [vmem:[#allocation4 + $0x20] sm:$0xff]
    %v387 = vld [vmem:[#allocation4 + $0x28] sm:$0xff]
    %v388 = vld [vmem:[#allocation4 + $0x30] sm:$0xff]
    %v389 = vld [vmem:[#allocation4 + $0x38] sm:$0xff]
    %v390 = vld [vmem:[#allocation4 + $0x40] sm:$0xff]
    %v391 = vld [vmem:[#allocation4 + $0x48] sm:$0xff]
    %v392 = vld [vmem:[#allocation4 + $0x50] sm:$0xff]
    %v393 = vld [vmem:[#allocation4 + $0x58] sm:$0xff]
    %v394 = vld [vmem:[#allocation4 + $0x60] sm:$0xff]
    %v395 = vld [vmem:[#allocation4 + $0x68] sm:$0xff]
    %v396 = vld [vmem:[#allocation4 + $0x70] sm:$0xff]
    %v397 = vld [vmem:[#allocation4 + $0x78] sm:$0xff]
    %v398 = vld [vmem:[#allocation4 + $0x80] sm:$0xff]
    %v399 = vld [vmem:[#allocation4 + $0x88] sm:$0xff]
    %v400 = vld [vmem:[#allocation4 + $0x90] sm:$0xff]
    %v401 = vld [vmem:[#allocation4 + $0x98] sm:$0xff]
    %v402 = vld [vmem:[#allocation4 + $0xa0] sm:$0xff]
    %v403 = vld [vmem:[#allocation4 + $0xa8] sm:$0xff]
    %v404 = vld [vmem:[#allocation4 + $0xb0] sm:$0xff]
    %v405 = vld [vmem:[#allocation4 + $0xb8] sm:$0xff]
    %v406 = vld [vmem:[#allocation4 + $0xc0] sm:$0xff]
    %v407 = vld [vmem:[#allocation4 + $0xc8] sm:$0xff]
    %v408 = vld [vmem:[#allocation4 + $0xd0] sm:$0xff]
    %v409 = vld [vmem:[#allocation4 + $0xd8] sm:$0xff]
    %v410 = vld [vmem:[#allocation4 + $0xe0] sm:$0xff]
    %v411 = vld [vmem:[#allocation4 + $0xe8] sm:$0xff]
    %v412 = vld [vmem:[#allocation4 + $0xf0] sm:$0xff]
    %v413 = vld [vmem:[#allocation4 + $0xf8] sm:$0xff]
    %v414 = vld [vmem:[#allocation4 + $0x100] sm:$0xff]
    %v415 = vld [vmem:[#allocation4 + $0x108] sm:$0xff]
    %v416 = vld [vmem:[#allocation4 + $0x110] sm:$0xff]
    %v417 = vld [vmem:[#allocation4 + $0x118] sm:$0xff]
    %v418 = vld [vmem:[#allocation4 + $0x120] sm:$0xff]
    %v419 = vld [vmem:[#allocation4 + $0x128] sm:$0xff]
    %v420 = vld [vmem:[#allocation4 + $0x130] sm:$0xff]
    %v421 = vld [vmem:[#allocation4 + $0x138] sm:$0xff]
    %v422 = vld [vmem:[%s9] sm:$0x3]
    %v424 = vlaneseq
    %v425 = vshrl.u32 %v424, 7
    %v426 = vsub.s32 0, %v425
    %v427 = vrot.slane %v422, %v426
    %v428 = vlaneseq
    %v429 = vshrl.u32 %v428, 7
    %v430 = vsub.s32 1, %v429
    %v431 = vrot.slane %v422, %v430
    %v435 = vsel %vm252, %v361, 0
    %437 = vmatprep.subr.mxu0 %v383
    %438 = vmatpush1.msra.mxu0 %v382
    %439 = vmatprep.subr.mxu0 %v385
    %440 = vmatpush1.msra.mxu0 %v384
    %441 = vmatprep.subr.mxu0 %v387
    %442 = vmatpush1.msra.mxu0 %v386
    %443 = vmatprep.subr.mxu0 %v389
    %444 = vmatpush1.msra.mxu0 %v388
    %445 = vmatprep.subr.mxu0 %v391
    %446 = vmatpush1.msra.mxu0 %v390
    %447 = vmatprep.subr.mxu0 %v393
    %448 = vmatpush1.msra.mxu0 %v392
    %449 = vmatprep.subr.mxu0 %v395
    %450 = vmatpush1.msra.mxu0 %v394
    %451 = vmatprep.subr.mxu0 %v397
    %452 = vmatpush1.msra.mxu0 %v396
    %453 = vmatprep.subr.mxu0 %v399
    %454 = vmatpush1.msra.mxu0 %v398
    %455 = vmatprep.subr.mxu0 %v401
    %456 = vmatpush1.msra.mxu0 %v400
    %457 = vmatprep.subr.mxu0 %v403
    %458 = vmatpush1.msra.mxu0 %v402
    %459 = vmatprep.subr.mxu0 %v405
    %460 = vmatpush1.msra.mxu0 %v404
    %461 = vmatprep.subr.mxu0 %v407
    %462 = vmatpush1.msra.mxu0 %v406
    %463 = vmatprep.subr.mxu0 %v409
    %464 = vmatpush1.msra.mxu0 %v408
    %465 = vmatprep.subr.mxu0 %v411
    %466 = vmatpush1.msra.mxu0 %v410
    %467 = vmatprep.subr.mxu0 %v413
    %468 = vmatpush1.msra.mxu0 %v412
    %469 = vmatprep.subr.mxu0 %v415
    %470 = vmatpush1.msra.mxu0 %v414
    %471 = vmatprep.subr.mxu0 %v417
    %472 = vmatpush1.msra.mxu0 %v416
    %473 = vmatprep.subr.mxu0 %v419
    %474 = vmatpush1.msra.mxu0 %v418
    %475 = vmatprep.subr.mxu0 %v421
    %476 = vmatpush1.msra.mxu0 %v420
    %477 = vmatprep.subr.mxu0 0.0
    %478 = vmatpush1.msra.mxu0 0.0
    %479 = vmatprep.subr.mxu0 0.0
    %480 = vmatpush1.msra.mxu0 0.0
    %481 = vmatprep.subr.mxu0 0.0
    %482 = vmatpush1.msra.mxu0 0.0
    %483 = vmatprep.subr.mxu0 0.0
    %484 = vmatpush1.msra.mxu0 0.0
    %485 = vmatprep.subr.mxu0 0.0
    %486 = vmatpush1.msra.mxu0 0.0
    %487 = vmatprep.subr.mxu0 0.0
    %488 = vmatpush1.msra.mxu0 0.0
    %489 = vmatprep.subr.mxu0 0.0
    %490 = vmatpush1.msra.mxu0 0.0
    %491 = vmatprep.subr.mxu0 0.0
    %492 = vmatpush1.msra.mxu0 0.0
    %493 = vmatprep.subr.mxu0 0.0
    %494 = vmatpush1.msra.mxu0 0.0
    %495 = vmatprep.subr.mxu0 0.0
    %496 = vmatpush1.msra.mxu0 0.0
    %497 = vmatprep.subr.mxu0 0.0
    %498 = vmatpush1.msra.mxu0 0.0
    %499 = vmatprep.subr.mxu0 0.0
    %500 = vmatpush1.msra.mxu0 0.0
    %501 = vmatprep.mubr.f32.mxu0 %v435
    %502 = vmatmul.mubr.f32.gmra.mrb[0].mxu0 %v381
    %v503 = vpop.f32.mrb[0].mxu0
    %v504 = vadd.f32 %v427, %v503
    %v505 = vpop.f32.mrb[0].mxu0
    %v506 = vadd.f32 %v431, %v505
    %507 = vdwg.mxu0
    %v508 = vmul.f32 %v504, 0.5
    %v509 = vtanh.pop %v508
    %v510 = vadd.f32 %v509, 1.0
    %v511 = vmul.f32 %v510, 0.5
    %v512 = vmul.f32 %v511, %v355
    %v513 = vand.u32 2147483647, %v504
    %v514 = vadd.f32 %v513, 1.0
    %v515 = vrcp.pop %v514
    %v516 = vmul.f32 %v504, %v515
    %518 = vrot.lane.b32.xlu0 %v516, 96
    %v519 = vpop.permute.xlu0 %518
    %v521 = vmul.f32 %v511, %v519
    %523 = vrot.lane.b32.xlu0 %v521, 96
    %v524 = vpop.permute.xlu0 %523
    %v526 = vadd.f32 %v512, %v524
    %v527 = vand.u32 2147483647, %v506
    %v528 = vadd.f32 %v527, 1.0
    %v529 = vrcp.pop %v528
    %v530 = vmul.f32 %v506, %v529
    %531 = vrot.lane.b32.xlu0 %v516, 32
    %v532 = vpop.permute.xlu0 %531
    %535 = vrot.lane.b32.xlu0 %v530, 32
    %v536 = vpop.permute.xlu0 %535
    %v538 = vsel %vm252, %v532, %v536
    %v539 = vld [vmem:[%s10] sm:$0xff]
    %v540 = vld [vmem:[%s10 + $0x8] sm:$0xff]
    %v541 = vld [vmem:[%s10 + $0x10] sm:$0xff]
    %v542 = vld [vmem:[%s10 + $0x18] sm:$0xff]
    %v543 = vld [vmem:[%s10 + $0x20] sm:$0xff]
    %v544 = vld [vmem:[%s10 + $0x28] sm:$0xff]
    %v545 = vld [vmem:[%s10 + $0x30] sm:$0xff]
    %v546 = vld [vmem:[%s10 + $0x38] sm:$0xff]
    %v548 = vsel %vm262, %v538, 0
    %550 = vmatprep.subr.mxu0 0.0
    %551 = vmatpush1.msra.mxu0 %v539
    %552 = vmatprep.subr.mxu0 0.0
    %553 = vmatpush1.msra.mxu0 %v540
    %554 = vmatprep.subr.mxu0 0.0
    %555 = vmatpush1.msra.mxu0 %v541
    %556 = vmatprep.subr.mxu0 0.0
    %557 = vmatpush1.msra.mxu0 %v542
    %558 = vmatprep.subr.mxu0 0.0
    %559 = vmatpush1.msra.mxu0 %v543
    %560 = vmatprep.subr.mxu0 0.0
    %561 = vmatpush1.msra.mxu0 %v544
    %562 = vmatprep.subr.mxu0 0.0
    %563 = vmatpush1.msra.mxu0 %v545
    %564 = vmatprep.subr.mxu0 0.0
    %565 = vmatpush1.msra.mxu0 %v546
    %566 = vmatprep.subr.mxu0 0.0
    %567 = vmatpush1.msra.mxu0 0.0
    %568 = vmatprep.subr.mxu0 0.0
    %569 = vmatpush1.msra.mxu0 0.0
    %570 = vmatprep.subr.mxu0 0.0
    %571 = vmatpush1.msra.mxu0 0.0
    %572 = vmatprep.subr.mxu0 0.0
    %573 = vmatpush1.msra.mxu0 0.0
    %574 = vmatprep.subr.mxu0 0.0
    %575 = vmatpush1.msra.mxu0 0.0
    %576 = vmatprep.subr.mxu0 0.0
    %577 = vmatpush1.msra.mxu0 0.0
    %578 = vmatprep.subr.mxu0 0.0
    %579 = vmatpush1.msra.mxu0 0.0
    %580 = vmatprep.subr.mxu0 0.0
    %581 = vmatpush1.msra.mxu0 0.0
    %582 = vmatprep.subr.mxu0 0.0
    %583 = vmatpush1.msra.mxu0 0.0
    %584 = vmatprep.subr.mxu0 0.0
    %585 = vmatpush1.msra.mxu0 0.0
    %586 = vmatprep.subr.mxu0 0.0
    %587 = vmatpush1.msra.mxu0 0.0
    %588 = vmatprep.subr.mxu0 0.0
    %589 = vmatpush1.msra.mxu0 0.0
    %590 = vmatprep.subr.mxu0 0.0
    %591 = vmatpush1.msra.mxu0 0.0
    %592 = vmatprep.subr.mxu0 0.0
    %593 = vmatpush1.msra.mxu0 0.0
    %594 = vmatprep.subr.mxu0 0.0
    %595 = vmatpush1.msra.mxu0 0.0
    %596 = vmatprep.subr.mxu0 0.0
    %597 = vmatpush1.msra.mxu0 0.0
    %598 = vmatprep.subr.mxu0 0.0
    %599 = vmatpush1.msra.mxu0 0.0
    %600 = vmatprep.subr.mxu0 0.0
    %601 = vmatpush1.msra.mxu0 0.0
    %602 = vmatprep.subr.mxu0 0.0
    %603 = vmatpush1.msra.mxu0 0.0
    %604 = vmatprep.subr.mxu0 0.0
    %605 = vmatpush1.msra.mxu0 0.0
    %606 = vmatprep.subr.mxu0 0.0
    %607 = vmatpush1.msra.mxu0 0.0
    %608 = vmatprep.subr.mxu0 0.0
    %609 = vmatpush1.msra.mxu0 0.0
    %610 = vmatprep.subr.mxu0 0.0
    %611 = vmatpush1.msra.mxu0 0.0
    %612 = vmatprep.subr.mxu0 0.0
    %613 = vmatpush1.msra.mxu0 0.0
    %614 = vmatprep.mubr.f32.mxu0 0.0
    %615 = vmatmul.mubr.f32.gmra.mrb[0].mxu0 %v548
    %v616 = vpop.f32.mrb[0].mxu0
    %v617 = vadd.f32 0.0, %v616
    %v618 = vpop.f32.mrb[0].mxu0
    %619 = vdwg.mxu0
    %621 = vrot.lane.b32.xlu0 %v617, 32
    %v622 = vpop.permute.xlu0 %621
    %v624 = vadd.f32 %v506, %v622
    %v625 = vmul.f32 %v624, 0.5
    %v626 = vtanh.pop %v625
    %v627 = vadd.f32 %v626, 1.0
    %v628 = vmul.f32 %v627, 0.5
    %v629 = vand.u32 2147483647, %v526
    %v630 = vadd.f32 %v629, 1.0
    %v631 = vrcp.pop %v630
    %v632 = vmul.f32 %v526, %v631
    %634 = vrot.lane.b32.xlu0 %v632, 32
    %v635 = vpop.permute.xlu0 %634
    %v637 = vmul.f32 %v628, %v635
    %v638 = vsel %vm252, %v364, %v637
    %640 = vrot.lane.b32.xlu0 %v526, 32
    %v641 = vpop.permute.xlu0 %640
    %v643 = vsel %vm252, %v240, %v641
    %v644 = vld [vmem:[%s11] sm:$0xff]
    %v645 = vld [vmem:[%s11 + $0x8] sm:$0xff]
    %v646 = vld [vmem:[%s11 + $0x10] sm:$0xff]
    %v647 = vld [vmem:[%s11 + $0x18] sm:$0xff]
    %v648 = vld [vmem:[%s11 + $0x20] sm:$0xff]
    %v649 = vld [vmem:[%s11 + $0x28] sm:$0xff]
    %v650 = vld [vmem:[%s11 + $0x30] sm:$0xff]
    %v651 = vld [vmem:[%s11 + $0x38] sm:$0xff]
    %v652 = vld [vmem:[%s12] sm:$0x1]
    %v654 = vlaneseq
    %v655 = vshrl.u32 %v654, 7
    %v656 = vsub.s32 0, %v655
    %v657 = vrot.slane %v652, %v656
    %v660 = vsel %vm262, %v638, 0
    %662 = vmatprep.subr.mxu0 0.0
    %663 = vmatpush1.msra.mxu0 %v644
    %664 = vmatprep.subr.mxu0 0.0
    %665 = vmatpush1.msra.mxu0 %v645
    %666 = vmatprep.subr.mxu0 0.0
    %667 = vmatpush1.msra.mxu0 %v646
    %668 = vmatprep.subr.mxu0 0.0
    %669 = vmatpush1.msra.mxu0 %v647
    %670 = vmatprep.subr.mxu0 0.0
    %671 = vmatpush1.msra.mxu0 %v648
    %672 = vmatprep.subr.mxu0 0.0
    %673 = vmatpush1.msra.mxu0 %v649
    %674 = vmatprep.subr.mxu0 0.0
    %675 = vmatpush1.msra.mxu0 %v650
    %676 = vmatprep.subr.mxu0 0.0
    %677 = vmatpush1.msra.mxu0 %v651
    %678 = vmatprep.subr.mxu0 0.0
    %679 = vmatpush1.msra.mxu0 0.0
    %680 = vmatprep.subr.mxu0 0.0
    %681 = vmatpush1.msra.mxu0 0.0
    %682 = vmatprep.subr.mxu0 0.0
    %683 = vmatpush1.msra.mxu0 0.0
    %684 = vmatprep.subr.mxu0 0.0
    %685 = vmatpush1.msra.mxu0 0.0
    %686 = vmatprep.subr.mxu0 0.0
    %687 = vmatpush1.msra.mxu0 0.0
    %688 = vmatprep.subr.mxu0 0.0
    %689 = vmatpush1.msra.mxu0 0.0
    %690 = vmatprep.subr.mxu0 0.0
    %691 = vmatpush1.msra.mxu0 0.0
    %692 = vmatprep.subr.mxu0 0.0
    %693 = vmatpush1.msra.mxu0 0.0
    %694 = vmatprep.subr.mxu0 0.0
    %695 = vmatpush1.msra.mxu0 0.0
    %696 = vmatprep.subr.mxu0 0.0
    %697 = vmatpush1.msra.mxu0 0.0
    %698 = vmatprep.subr.mxu0 0.0
    %699 = vmatpush1.msra.mxu0 0.0
    %700 = vmatprep.subr.mxu0 0.0
    %701 = vmatpush1.msra.mxu0 0.0
    %702 = vmatprep.subr.mxu0 0.0
    %703 = vmatpush1.msra.mxu0 0.0
    %704 = vmatprep.subr.mxu0 0.0
    %705 = vmatpush1.msra.mxu0 0.0
    %706 = vmatprep.subr.mxu0 0.0
    %707 = vmatpush1.msra.mxu0 0.0
    %708 = vmatprep.subr.mxu0 0.0
    %709 = vmatpush1.msra.mxu0 0.0
    %710 = vmatprep.subr.mxu0 0.0
    %711 = vmatpush1.msra.mxu0 0.0
    %712 = vmatprep.subr.mxu0 0.0
    %713 = vmatpush1.msra.mxu0 0.0
    %714 = vmatprep.subr.mxu0 0.0
    %715 = vmatpush1.msra.mxu0 0.0
    %716 = vmatprep.subr.mxu0 0.0
    %717 = vmatpush1.msra.mxu0 0.0
    %718 = vmatprep.subr.mxu0 0.0
    %719 = vmatpush1.msra.mxu0 0.0
    %720 = vmatprep.subr.mxu0 0.0
    %721 = vmatpush1.msra.mxu0 0.0
    %722 = vmatprep.subr.mxu0 0.0
    %723 = vmatpush1.msra.mxu0 0.0
    %724 = vmatprep.subr.mxu0 0.0
    %725 = vmatpush1.msra.mxu0 0.0
    %726 = vmatprep.mubr.f32.mxu0 0.0
    %727 = vmatmul.mubr.f32.gmra.mrb[0].mxu0 %v660
    %v728 = vpop.f32.mrb[0].mxu0
    %v729 = vadd.f32 %v657, %v728
    %v730 = vpop.f32.mrb[0].mxu0
    %731 = vdwg.mxu0
    %733 = vrot.lane.b32.xlu0 %v643, 64
    %v734 = vpop.permute.xlu0 %733
    %v736 = vsel %vm262, %v638, %v734
    %vm737 = vcmask 64512
    %v738 = vsel %vm737, %v729, 0.0
    %v741 = vcombine.low %v736, %v738
    %v743 = vunpack.c.l.s4 1983009808
    %v744 = vunpack.c.0.s8 %v743
    %v745 = vlaneseq
    %v746 = vshrl.u32 %v745, 7
    %v747 = vsub.s32 %v744, %v746
    %v748 = vrot.slane %v741, %v747
    %750 = vst [vmem:[%s13] sm:$0xf] %v748
    // Predicated region
    $region62: #{trace_lstm_forward.1} parent=1 // pred_check
      _
    $region63: #{trace_lstm_forward.1} parent=1 // pred_check_branch
      %752 = sbr.rel (0) target = $region65
    $region64: #{trace_lstm_forward.1} parent=1 // pred_region
      _
    $region65: #{trace_lstm_forward.1} parent=1 // pred_fallthru
      _
    // Predicated region
    $region66: #{trace_lstm_forward.1} parent=1 // pred_check
      _
    $region67: #{trace_lstm_forward.1} parent=1 // pred_check_branch
      %754 = sbr.rel (0) target = $region69
    $region68: #{trace_lstm_forward.1} parent=1 // pred_region
      _
    $region69: #{trace_lstm_forward.1} parent=1 // pred_fallthru
      _
    %755 = vsyncpa [#allocation3], 1
    %756 = vsyncpa [#allocation5], 1

</llo_original>
